<compile_context>
chip_gen: v5e
topology: v5e:2x2
jax: 0.10.0
libtpu: 0.0.40
codegen_flags: <defaults>
</compile_context>

<pallas_src>
import functools
import math

import jax
import jax.numpy as jnp
from jax import lax
from jax.experimental import pallas as pl
from jax.experimental.pallas import tpu as pltpu


def _softce_rowloss_kernel(logits_ref, tgt_ref, out_ref, *,
                           total_rows, block_rows, mask_tail):
    """Per-row -<t, log_softmax(x)>; output block is lane-dense (1, block_rows)."""
    x = logits_ref[...]                                    # (tb, C), native dtype
    t = tgt_ref[...]                                       # (tb, C), native dtype

    if mask_tail:
        valid = total_rows - pl.program_id(0) * block_rows
        rmask = lax.broadcasted_iota(jnp.int32, (block_rows, 1), 0) < valid
        t = jnp.where(rmask, t, jnp.zeros_like(t))

    # Row max on the native-dtype tile (exact for max), upcast only the scalar column.
    m = jnp.max(x, axis=-1, keepdims=True).astype(jnp.float32)      # (tb, 1)
    xm = x.astype(jnp.float32) - m                                   # (tb, C), <= 0
    if mask_tail:
        xm = jnp.where(rmask, xm, 0.0)     # keep exp finite on garbage tail rows

    e = jnp.exp(xm)                                                  # EUP
    tf = t.astype(jnp.float32)

    # Per-row reductions on the MXU (single-pass, default precision, f32 acc).
    # Results are lane-major (1, block_rows) -> full-lane output stores.
    ones = jnp.ones((1, x.shape[-1]), jnp.float32)
    dims = (((1,), (1,)), ((), ()))
    sum_t = lax.dot_general(ones, tf, dims,
                            preferred_element_type=jnp.float32)       # (1, tb)
    sum_txm = lax.dot_general(ones, tf * xm, dims,
                              preferred_element_type=jnp.float32)     # (1, tb)
    sum_e = lax.dot_general(ones, e, dims,
                            preferred_element_type=jnp.float32)       # (1, tb)

    # loss = lse*sum(t) - sum(t*x) = log(sum e)*sum(t) - sum(t*(x-m))
    out_ref[...] = jnp.log(sum_e) * sum_t - sum_txm


def _choose_tile(B, C, in_itemsize_sum):
    """Pick the batch tile from the VMEM budget; return (block_b, vmem_limit)."""
    try:
        phys_vmem = int(pltpu.get_tpu_info().vmem_capacity_bytes)
    except Exception:
        phys_vmem = 64 * 1024 * 1024       # conservative fallback (v7x per-TC VMEM)

    # Per-row footprint: double-buffered native-dtype inputs + ~3 f32 (row, C)
    # intermediates that are live inside the kernel (x-m, exp(x-m), t*(x-m)).
    per_row = 2 * C * in_itemsize_sum + 3 * C * 4
    budget = min(phys_vmem // 2, 48 << 20)

    bb = max(128, (budget // per_row) // 128 * 128)
    # TODO(synk): class-dim (C) tiling with online max/LSE accumulation for
    # vocab-scale C where even a 128-row tile overflows the VMEM budget.

    if B >= 256:
        # Keep at least two grid blocks so the "parallel" batch axis can be
        # sharded across both v7x TensorCores.
        half = ((-(-B // 2)) + 127) // 128 * 128
        bb = min(bb, half)

    block_b = B if B <= bb else bb

    est = 2 * block_b * C * in_itemsize_sum + 3 * block_b * C * 4
    vmem_limit = int(min(phys_vmem * 3 // 4, est + (32 << 20)))
    return block_b, vmem_limit


@functools.partial(jax.jit, static_argnames=("reduction",))
def soft_ce(logits, soft_targets, reduction="mean"):
    if logits.shape != soft_targets.shape:
        raise ValueError("logits and soft_targets must have the same shape")
    if reduction not in ("mean", "sum", "none"):
        raise ValueError(f"Reduction type '{reduction}' is not supported!")

    orig_shape = logits.shape
    C = orig_shape[-1]
    B = math.prod(orig_shape[:-1]) if len(orig_shape) > 1 else 1
    logits2 = logits.reshape(B, C)
    targets2 = soft_targets.reshape(B, C)

    in_itemsize_sum = (jnp.dtype(logits2.dtype).itemsize
                       + jnp.dtype(targets2.dtype).itemsize)
    block_b, vmem_limit = _choose_tile(B, C, in_itemsize_sum)
    num_blocks = pl.cdiv(B, block_b)
    mask_tail = (B % block_b) != 0

    kernel = functools.partial(
        _softce_rowloss_kernel,
        total_rows=B, block_rows=block_b, mask_tail=mask_tail)

    row_losses = pl.pallas_call(
        kernel,
        out_shape=jax.ShapeDtypeStruct((1, B), jnp.float32),
        grid_spec=pltpu.PrefetchScalarGridSpec(
            num_scalar_prefetch=0,
            grid=(num_blocks,),
            in_specs=[
                pl.BlockSpec((block_b, C), lambda i: (i, 0)),
                pl.BlockSpec((block_b, C), lambda i: (i, 0)),
            ],
            # Lane-dense output slab; each grid step writes a disjoint block.
            out_specs=pl.BlockSpec((1, block_b), lambda i: (0, i)),
        ),
        compiler_params=pltpu.CompilerParams(
            dimension_semantics=("parallel",),   # no accumulator; megacore-shardable
            vmem_limit_bytes=vmem_limit,
        ),
    )(logits2, targets2)

    loss = row_losses[0]
    if reduction == "mean":
        return jnp.mean(loss)
    if reduction == "sum":
        return jnp.sum(loss)
    return loss.reshape(orig_shape[:-1])


def _reference(logits, soft_targets, reduction="mean"):
    logp = jax.nn.log_softmax(logits.astype(jnp.float32), axis=-1)
    loss = jnp.sum(-soft_targets.astype(jnp.float32) * logp, axis=-1)
    if reduction == "mean":
        return jnp.mean(loss)
    if reduction == "sum":
        return jnp.sum(loss)
    return loss


if __name__ == "__main__":
    key = jax.random.PRNGKey(0)
    k1, k2, k3, k4 = jax.random.split(key, 4)

    # Small single-block test, f32 inputs (batch=16, classes=32).
    B, C = 16, 32
    logits = jax.random.normal(k1, (B, C), dtype=jnp.float32)
    soft_targets = jax.nn.softmax(
        jax.random.normal(k2, (B, C), dtype=jnp.float32), axis=-1)

    out_mean = jax.block_until_ready(soft_ce(logits, soft_targets, reduction="mean"))
    out_sum = jax.block_until_ready(soft_ce(logits, soft_targets, reduction="sum"))
    out_none = jax.block_until_ready(soft_ce(logits, soft_targets, reduction="none"))

    ref_mean = _reference(logits, soft_targets, "mean")
    ref_sum = _reference(logits, soft_targets, "sum")
    ref_none = _reference(logits, soft_targets, "none")

    assert jnp.allclose(out_mean, ref_mean, rtol=2e-3, atol=2e-3)
    assert jnp.allclose(out_sum, ref_sum, rtol=2e-3, atol=2e-3)
    assert jnp.allclose(out_none, ref_none, rtol=2e-3, atol=2e-3)

    # Multi-block, ragged-tail (no-padding), native-bf16 streaming path:
    # B=2181 -> two grid blocks, last block masked inside the kernel.
    B2, C2 = 2181, 128
    lg2 = jax.random.normal(k3, (B2, C2), dtype=jnp.bfloat16)
    tg2 = jax.nn.softmax(
        jax.random.normal(k4, (B2, C2), dtype=jnp.float32), axis=-1
    ).astype(jnp.bfloat16)
    out2 = jax.block_until_ready(soft_ce(lg2, tg2, reduction="mean"))
    ref2 = _reference(lg2, tg2, "mean")
    assert jnp.allclose(out2, ref2, rtol=2e-3, atol=2e-3)

    out2n = jax.block_until_ready(soft_ce(lg2, tg2, reduction="none"))
    ref2n = _reference(lg2, tg2, "none")
    assert jnp.allclose(out2n, ref2n, rtol=2e-3, atol=2e-3)

    print("KERNEL_OK")
</pallas_src>

<mosaic_0001>
module attributes {stable_mosaic.version = 11 : i64} {
  func.func @_softce_rowloss_kernel(%arg0: i32, %arg1: memref<16x32xf32, #tpu.memory_space<vmem>>, %arg2: memref<16x32xf32, #tpu.memory_space<vmem>>, %arg3: memref<1x16xf32, #tpu.memory_space<vmem>>) attributes {dimension_semantics = [#tpu.dimension_semantics<parallel>], iteration_bounds = array<i64: 1>, scalar_prefetch = 0 : i64, scratch_operands = 0 : i64, tpu.core_type = #tpu.core_type<tc>, window_params = [{transform_indices = @transform_0, window_bounds = array<i64: 16, 32>}, {transform_indices = @transform_1, window_bounds = array<i64: 16, 32>}, {transform_indices = @transform_2, window_bounds = array<i64: 1, 16>}]} {
    %c0 = arith.constant 0 : index
    %c0_0 = arith.constant 0 : index
    %0 = vector.load %arg1[%c0, %c0_0] : memref<16x32xf32, #tpu.memory_space<vmem>>, vector<16x32xf32>
    %c0_1 = arith.constant 0 : index
    %c0_2 = arith.constant 0 : index
    %1 = vector.load %arg2[%c0_1, %c0_2] : memref<16x32xf32, #tpu.memory_space<vmem>>, vector<16x32xf32>
    %cst = arith.constant dense<0xFF800000> : vector<16xf32>
    %2 = vector.multi_reduction <maximumf>, %0, %cst [1] : vector<16x32xf32> to vector<16xf32>
    %3 = vector.shape_cast %2 : vector<16xf32> to vector<16x1xf32>
    %4 = vector.broadcast %3 : vector<16x1xf32> to vector<16x32xf32>
    %5 = arith.subf %0, %4 : vector<16x32xf32>
    %6 = math.exp %5 : vector<16x32xf32>
    %cst_3 = arith.constant 1.000000e+00 : f32
    %7 = vector.broadcast %cst_3 : f32 to vector<1x32xf32>
    %cst_4 = arith.constant dense<0.000000e+00> : vector<1x16xf32>
    %8 = tpu.matmul %7, %1, %cst_4 {dimension_numbers = #tpu.dot_dimension_numbers<[1], [1], [0], [0], [0, 0, 1, 0], [], []>} : vector<1x32xf32>, vector<16x32xf32>, vector<1x16xf32> -> vector<1x16xf32>
    %9 = arith.mulf %1, %5 : vector<16x32xf32>
    %cst_5 = arith.constant dense<0.000000e+00> : vector<1x16xf32>
    %10 = tpu.matmul %7, %9, %cst_5 {dimension_numbers = #tpu.dot_dimension_numbers<[1], [1], [0], [0], [0, 0, 1, 0], [], []>} : vector<1x32xf32>, vector<16x32xf32>, vector<1x16xf32> -> vector<1x16xf32>
    %cst_6 = arith.constant dense<0.000000e+00> : vector<1x16xf32>
    %11 = tpu.matmul %7, %6, %cst_6 {dimension_numbers = #tpu.dot_dimension_numbers<[1], [1], [0], [0], [0, 0, 1, 0], [], []>} : vector<1x32xf32>, vector<16x32xf32>, vector<1x16xf32> -> vector<1x16xf32>
    %12 = math.log %11 : vector<1x16xf32>
    %13 = arith.mulf %12, %8 : vector<1x16xf32>
    %14 = arith.subf %13, %10 : vector<1x16xf32>
    %c0_7 = arith.constant 0 : index
    %c0_8 = arith.constant 0 : index
    %15 = vector.load %arg3[%c0_7, %c0_8] : memref<1x16xf32, #tpu.memory_space<vmem>>, vector<1x16xf32>
    tpu.vector_store %arg3[%c0_7, %c0_8], %14 {strides = array<i32>} : memref<1x16xf32, #tpu.memory_space<vmem>>, vector<1x16xf32>,
    return
  }
  func.func @transform_0(%arg0: i32) -> (i32, i32) {
    %c0_i32 = arith.constant 0 : i32
    %c0_i32_0 = arith.constant 0 : i32
    return %arg0, %c0_i32 : i32, i32
  }
  func.func @transform_1(%arg0: i32) -> (i32, i32) {
    %c0_i32 = arith.constant 0 : i32
    %c0_i32_0 = arith.constant 0 : i32
    return %arg0, %c0_i32 : i32, i32
  }
  func.func @transform_2(%arg0: i32) -> (i32, i32) {
    %c0_i32 = arith.constant 0 : i32
    %c0_i32_0 = arith.constant 0 : i32
    return %c0_i32, %arg0 : i32, i32
  }
}

</mosaic_0001>

<llo_original>
// kernel: soft_ce.1
$region0: #{soft_ce.1}
  #allocation0 [shape = 'u32[]', space=smem, size = 0x4, offset = 0x4, fixed_abs, tag = 'smem constant byte address 0x4 - core index']
  #allocation1 [shape = 'u32[72,128]{1,0:T(1,128)}', space=vmem, size = 0x9000, scoped, tag = 'internal scratch']
  %s0 = inlined_call_operand.hbm [shape: f32[16,32], index: 0, kind: input, shape index: {}]
  %s1 = inlined_call_operand.hbm [shape: f32[16,32], index: 1, kind: input, shape index: {}]
  %s2 = inlined_call_operand.vmem [shape: f32[1,16], index: 2, kind: output, shape index: {}]
  %s3 = sld [smem:[#allocation0]]
  $region26: #{soft_ce.1} parent=0
    _
  %s5 = ssub.s32 1, %s3
  %s6 = scalar_select 0, %s5, %s3
  $region1: #{soft_ce.1} parent=0
    #allocation2 [shape = 'u8[8192]{0}', space=vmem, size = 0x2000, scoped, tag = 'input window, operand 0, single buffered']
    #allocation3 [shape = 's32[1]{0}', space=sflag, size = 0x4, scoped, tag = 'scoped memory for soft_ce.1']
    #allocation4 [shape = 'u8[8192]{0}', space=vmem, size = 0x2000, scoped, tag = 'input window, operand 1, single buffered']
    #allocation5 [shape = 's32[1]{0}', space=sflag, size = 0x4, scoped, tag = 'scoped memory for soft_ce.1']
    %7 = vsyncpa [#allocation3], 0
    %8 = vsyncpa [#allocation5], 0
    // Predicated region
    $region2: #{soft_ce.1} parent=1 // pred_check
      _
    $region3: #{soft_ce.1} parent=1 // pred_check_branch
      %10 = sbr.rel (0) target = $region5
    $region4: #{soft_ce.1} parent=1 // pred_region
      %12 = vsyncadd [#allocation3], 0
      %s13 = sshll.u32 %s0, 4
      %s14 = int_to_ptr.hbm [resolvable:$true] %s13
      %s15 = sshll.u32 [#allocation2], 4
      %s16 = int_to_ptr.vmem [resolvable:$true] %s15
      %21 = dma.hbm_to_vmem [thread:$0]  %s14, 256, %s16, [#allocation3], 128, 128, 8
    $region5: #{soft_ce.1} parent=1 // pred_fallthru
      _
    // Predicated region
    $region6: #{soft_ce.1} parent=1 // pred_check
      _
    $region7: #{soft_ce.1} parent=1 // pred_check_branch
      %23 = sbr.rel (0) target = $region9
    $region8: #{soft_ce.1} parent=1 // pred_region
      %25 = vsyncadd [#allocation5], 0
      %s26 = sshll.u32 %s1, 4
      %s27 = int_to_ptr.hbm [resolvable:$true] %s26
      %s28 = sshll.u32 [#allocation4], 4
      %s29 = int_to_ptr.vmem [resolvable:$true] %s28
      %34 = dma.hbm_to_vmem [thread:$0]  %s27, 256, %s29, [#allocation5], 128, 128, 8
    $region9: #{soft_ce.1} parent=1 // pred_fallthru
      _
    // Predicated region
    $region10: #{soft_ce.1} parent=1 // pred_check
      _
    $region11: #{soft_ce.1} parent=1 // pred_check_branch
      %36 = sbr.rel (0) target = $region13
    $region12: #{soft_ce.1} parent=1 // pred_region
      %38 = dma.done [#allocation3], 256
    $region13: #{soft_ce.1} parent=1 // pred_fallthru
      _
    // Predicated region
    $region14: #{soft_ce.1} parent=1 // pred_check
      _
    $region15: #{soft_ce.1} parent=1 // pred_check_branch
      %40 = sbr.rel (0) target = $region17
    $region16: #{soft_ce.1} parent=1 // pred_region
      %42 = dma.done [#allocation5], 256
    $region17: #{soft_ce.1} parent=1 // pred_fallthru
      _
    %v43 = vld [vmem:[#allocation2] sm:$0xff]
    %v44 = vld [vmem:[#allocation2 + $0x8] sm:$0xff]
    %v45 = vld [vmem:[#allocation4] sm:$0xff]
    %v46 = vld [vmem:[#allocation4 + $0x8] sm:$0xff]
    %vm47 = vcmask 261120
    %v48 = vsel %vm47, %v43, -inf
    %49 = vmax.xlane.f32.xlu0 %v48
    %v50 = vpop.xlane.xlu0 %49
    %v51 = vsel %vm47, %v44, -inf
    %52 = vmax.xlane.f32.xlu0 %v51
    %v53 = vpop.xlane.xlu0 %52
    %v54 = vsub.f32 %v43, %v50
    %v55 = vsub.f32 %v44, %v53
    %v56 = vmul.f32 %v54, 1.442695
    %v57 = vpow.pop %v56
    %v58 = vmul.f32 %v55, 1.442695
    %v59 = vpow.pop %v58
    %v61 = vsel %vm47, 1.0, 0
    %v64 = vsel %vm47, %v45, 0
    %v67 = vsel %vm47, %v46, 0
    %69 = vmatpush.xpose.msra.mxu0 0.0
    %70 = vmatpush.xpose.msra.mxu0 0.0
    %71 = vmatpush.xpose.msra.mxu0 0.0
    %72 = vmatpush.xpose.msra.mxu0 0.0
    %73 = vmatpush.xpose.msra.mxu0 0.0
    %74 = vmatpush.xpose.msra.mxu0 0.0
    %75 = vmatpush.xpose.msra.mxu0 0.0
    %76 = vmatpush.xpose.msra.mxu0 0.0
    %77 = vmatpush.xpose.msra.mxu0 0.0
    %78 = vmatpush.xpose.msra.mxu0 0.0
    %79 = vmatpush.xpose.msra.mxu0 0.0
    %80 = vmatpush.xpose.msra.mxu0 0.0
    %81 = vmatpush.xpose.msra.mxu0 0.0
    %82 = vmatpush.xpose.msra.mxu0 0.0
    %83 = vmatpush.xpose.msra.mxu0 %v67
    %84 = vmatpush.xpose.msra.mxu0 %v64
    %85 = vmatmul.f32.gmra.mxu0 %v61
    %v86 = vpop.f32.mrf.mxu0
    %v87 = vadd.f32 0.0, %v86
    %88 = vdwg.mxu0
    %v89 = vmul.f32 %v45, %v54
    %v90 = vmul.f32 %v46, %v55
    %v92 = vsel %vm47, %v89, 0
    %v95 = vsel %vm47, %v90, 0
    %97 = vmatpush.xpose.msra.mxu0 0.0
    %98 = vmatpush.xpose.msra.mxu0 0.0
    %99 = vmatpush.xpose.msra.mxu0 0.0
    %100 = vmatpush.xpose.msra.mxu0 0.0
    %101 = vmatpush.xpose.msra.mxu0 0.0
    %102 = vmatpush.xpose.msra.mxu0 0.0
    %103 = vmatpush.xpose.msra.mxu0 0.0
    %104 = vmatpush.xpose.msra.mxu0 0.0
    %105 = vmatpush.xpose.msra.mxu0 0.0
    %106 = vmatpush.xpose.msra.mxu0 0.0
    %107 = vmatpush.xpose.msra.mxu0 0.0
    %108 = vmatpush.xpose.msra.mxu0 0.0
    %109 = vmatpush.xpose.msra.mxu0 0.0
    %110 = vmatpush.xpose.msra.mxu0 0.0
    %111 = vmatpush.xpose.msra.mxu0 %v95
    %112 = vmatpush.xpose.msra.mxu0 %v92
    %113 = vmatmul.f32.gmra.mxu0 %v61
    %v114 = vpop.f32.mrf.mxu0
    %v115 = vadd.f32 0.0, %v114
    %116 = vdwg.mxu0
    %v118 = vsel %vm47, %v57, 0
    %v121 = vsel %vm47, %v59, 0
    %123 = vmatpush.xpose.msra.mxu0 0.0
    %124 = vmatpush.xpose.msra.mxu0 0.0
    %125 = vmatpush.xpose.msra.mxu0 0.0
    %126 = vmatpush.xpose.msra.mxu0 0.0
    %127 = vmatpush.xpose.msra.mxu0 0.0
    %128 = vmatpush.xpose.msra.mxu0 0.0
    %129 = vmatpush.xpose.msra.mxu0 0.0
    %130 = vmatpush.xpose.msra.mxu0 0.0
    %131 = vmatpush.xpose.msra.mxu0 0.0
    %132 = vmatpush.xpose.msra.mxu0 0.0
    %133 = vmatpush.xpose.msra.mxu0 0.0
    %134 = vmatpush.xpose.msra.mxu0 0.0
    %135 = vmatpush.xpose.msra.mxu0 0.0
    %136 = vmatpush.xpose.msra.mxu0 0.0
    %137 = vmatpush.xpose.msra.mxu0 %v121
    %138 = vmatpush.xpose.msra.mxu0 %v118
    %139 = vmatmul.f32.gmra.mxu0 %v61
    %v140 = vpop.f32.mrf.mxu0
    %v141 = vadd.f32 0.0, %v140
    %142 = vdwg.mxu0
    %v143 = vlog2.pop %v141
    %v144 = vmul.f32 %v143, 0.6931472
    %v145 = vmul.f32 %v144, %v87
    %v146 = vsub.f32 %v145, %v115
    %vm147 = vcmask 122880
    %148 = vst.msk [vmem:[%s2] sm:$0x1] %vm147, %v146
    // Predicated region
    $region18: #{soft_ce.1} parent=1 // pred_check
      _
    $region19: #{soft_ce.1} parent=1 // pred_check_branch
      %150 = sbr.rel (0) target = $region21
    $region20: #{soft_ce.1} parent=1 // pred_region
      _
    $region21: #{soft_ce.1} parent=1 // pred_fallthru
      _
    // Predicated region
    $region22: #{soft_ce.1} parent=1 // pred_check
      _
    $region23: #{soft_ce.1} parent=1 // pred_check_branch
      %152 = sbr.rel (0) target = $region25
    $region24: #{soft_ce.1} parent=1 // pred_region
      _
    $region25: #{soft_ce.1} parent=1 // pred_fallthru
      _
    %153 = vsyncpa [#allocation3], 1
    %154 = vsyncpa [#allocation5], 1

</llo_original>
